<compile_context>
chip_gen: v6e
topology: v6e:2x2x1
jax: 0.10.0
libtpu: 0.0.40
codegen_flags: <defaults>
</compile_context>

<pallas_src>
import functools

import jax
import jax.numpy as jnp
from jax import lax
from jax.experimental import pallas as pl
from jax.experimental.pallas import tpu as pltpu


def _round_up(x, m):
    return ((x + m - 1) // m) * m


# --------------------------------------------------------------------------- #
# Path A: table VMEM-resident, gather expressed as a one-hot matmul on the MXU.
# --------------------------------------------------------------------------- #
def _onehot_gather_kernel(ids_ref, w_ref, o_ref, *, vocab, v_chunk):
    """o[r, :] = w[ids[r], :], computed as onehot(ids) @ w.

    The one-hot is built with iota+compare (VPU) and contracted on the MXU, so
    there is no dynamic-sublane addressing and every store is a full-tile store.
    The vocab axis is chunked (static Python loop, unrolled) to bound the
    (tn, v_chunk) one-hot slab in VMEM/vregs.
    """
    ids = ids_ref[...]                              # (tn, 1) int32
    tn = ids.shape[0]
    d = o_ref.shape[1]
    acc = jnp.zeros((tn, d), jnp.float32)
    for v0 in range(0, vocab, v_chunk):
        vc = min(v_chunk, vocab - v0)
        cols = lax.broadcasted_iota(jnp.int32, (tn, vc), 1) + v0
        onehot = (cols == ids).astype(w_ref.dtype)  # exact 0/1 selector
        acc = acc + jnp.dot(onehot, w_ref[pl.ds(v0, vc), :],
                            preferred_element_type=jnp.float32)
    o_ref[...] = acc.astype(o_ref.dtype)


# --------------------------------------------------------------------------- #
# Path B: table stays in HBM, manual row-gather DMAs with a deep in-flight queue.
# --------------------------------------------------------------------------- #
def _hbm_gather_kernel(ids_ref, w_hbm, o_ref, sems, *, block_rows, depth):
    nsem = 2 * depth                                # 2x sems -> start before wait
    base = pl.multiple_of(pl.program_id(0) * block_rows, 8)

    def start_row(r):
        idx = ids_ref[base + r]                     # scalar id from SMEM
        pltpu.make_async_copy(
            w_hbm.at[idx],                          # (D,) row in HBM
            o_ref.at[r],                            # (D,) row of the VMEM block
            sems.at[r % nsem],
        ).start()

    # Prime the DMA queue (static unroll keeps all starts visible to the scheduler).
    for r in range(depth):
        start_row(r)

    @pl.loop(0, block_rows)
    def _(r):
        # Keep the queue full: issue the refill for row r+depth BEFORE waiting on
        # row r (distinct semaphore slot, so no dependency on the wait below).
        @pl.when(r + depth < block_rows)
        def _():
            start_row(r + depth)

        # Wait for row r's gather; descriptor rebuilt with identical src/dst refs.
        pltpu.make_async_copy(
            w_hbm.at[ids_ref[base + r]], o_ref.at[r], sems.at[r % nsem]
        ).wait()


# --------------------------------------------------------------------------- #
# Wrapper
# --------------------------------------------------------------------------- #
def embedding_lookup(X, weights, *, block_rows=None, dma_depth=16,
                     onehot_max_vocab=16384, onehot_vocab_chunk=2048,
                     vmem_budget_bytes=None):
    """Pallas equivalent of nn.Embedding(...)(X): returns weights[X]."""
    batch_shape = X.shape
    V, D = weights.shape
    dtype = weights.dtype
    itemsize = jnp.dtype(dtype).itemsize

    # Flatten and clamp (OOB ids would otherwise become OOB DMAs / dead one-hots).
    ids = jnp.clip(X.reshape(-1).astype(jnp.int32), 0, V - 1)
    N = int(ids.shape[0])
    table_bytes = V * D * itemsize

    # Per-TensorCore VMEM budget (v7x: 64 MiB/TC, v5e/v6e: 128 MiB).  Half the
    # reported capacity keeps headroom even if the query is not per-TC on v7x.
    if vmem_budget_bytes is None:
        try:
            vmem_cap = int(pltpu.get_tpu_info().vmem_capacity_bytes)
        except Exception:
            vmem_cap = 64 << 20                     # conservative (v7x per-TC)
        vmem_budget_bytes = vmem_cap // 2

    # ---- resident (one-hot MXU) path sizing -------------------------------- #
    tn_res = 256 if block_rows is None else int(block_rows)
    tn_res = _round_up(max(8, min(tn_res, _round_up(N, 8))), 8)
    v_chunk = max(1, min(onehot_vocab_chunk, V))
    resident_need = (2 * table_bytes                # table may be double-buffered
                     + 2 * tn_res * D * itemsize    # output block (double-buffered)
                     + 2 * tn_res * 4               # ids block (double-buffered)
                     + tn_res * v_chunk * 4         # one-hot slab
                     + tn_res * D * 4               # f32 accumulator
                     + (2 << 20))                   # Mosaic internal scratch slack
    use_resident = (V <= onehot_max_vocab) and (resident_need <= vmem_budget_bytes)

    if use_resident:
        tn = tn_res
        n_pad = _round_up(N, tn)
        if n_pad != N:
            ids = jnp.pad(ids, (0, n_pad - N))
        n_blocks = n_pad // tn
        ids2d = ids.reshape(n_pad, 1)               # (tn, 1) VMEM blocks

        kernel = functools.partial(_onehot_gather_kernel, vocab=V, v_chunk=v_chunk)
        grid_spec = pltpu.PrefetchScalarGridSpec(
            num_scalar_prefetch=0,
            grid=(n_blocks,),
            in_specs=[
                pl.BlockSpec((tn, 1), lambda b: (b, 0)),  # per-block ids (VMEM)
                pl.BlockSpec((V, D), lambda b: (0, 0)),   # full table, fetched once
            ],
            out_specs=pl.BlockSpec((tn, D), lambda b: (b, 0)),
        )
        compiler_params = pltpu.CompilerParams(
            dimension_semantics=("parallel",),
            vmem_limit_bytes=int(max(resident_need + (8 << 20), 32 << 20)),
        )
        args = (ids2d, weights)
    else:
        tn = 512 if block_rows is None else int(block_rows)
        tn = _round_up(max(8, min(tn, _round_up(N, 8))), 8)
        n_pad = _round_up(N, tn)
        if n_pad != N:
            ids = jnp.pad(ids, (0, n_pad - N))
        n_blocks = n_pad // tn
        depth = max(1, min(dma_depth, tn))

        kernel = functools.partial(_hbm_gather_kernel, block_rows=tn, depth=depth)
        grid_spec = pltpu.PrefetchScalarGridSpec(
            num_scalar_prefetch=1,                  # ids -> SMEM scalars
            grid=(n_blocks,),
            in_specs=[pl.BlockSpec(memory_space=pl.ANY)],     # table stays in HBM
            out_specs=pl.BlockSpec((tn, D), lambda b, ids_ref: (b, 0)),
            scratch_shapes=[pltpu.SemaphoreType.DMA((2 * depth,))],
        )
        compiler_params = pltpu.CompilerParams(
            dimension_semantics=("parallel",),
        )
        args = (ids, weights)

    out = pl.pallas_call(
        kernel,
        out_shape=jax.ShapeDtypeStruct((n_pad, D), dtype),
        grid_spec=grid_spec,
        compiler_params=compiler_params,
    )(*args)

    return out[:N].reshape(*batch_shape, D)


if __name__ == "__main__":
    vocab, embed_dim = 64, 128
    batch, seq = 2, 8

    key = jax.random.PRNGKey(0)
    k_w, k_x = jax.random.split(key)

    embedding_weights = jax.random.normal(k_w, (vocab, embed_dim), dtype=jnp.float32)
    embedding_weights = embedding_weights.at[0].set(0.0)  # padding_idx=0 row

    X = jax.random.randint(k_x, (batch, seq), minval=0, maxval=vocab, dtype=jnp.int32)
    X = X.at[0, 0].set(0)  # ensure a padding token appears

    ref = embedding_weights[X]

    # Fast path: 32 KiB table is VMEM-resident; one-hot MXU gather.
    # (Tolerance covers the worst-case multi-pass f32 MXU rounding; any wrong-row
    #  gather would differ by O(1) per element and is still caught.)
    out_fast = jax.block_until_ready(embedding_lookup(X, embedding_weights))
    assert out_fast.shape == (batch, seq, embed_dim)
    assert jnp.allclose(out_fast, ref, rtol=1e-4, atol=1e-4), "one-hot MXU gather mismatch"

    # Large-table fallback path (manual HBM row-gather DMAs), forced via budget=0.
    out_hbm = jax.block_until_ready(
        embedding_lookup(X, embedding_weights, vmem_budget_bytes=0))
    assert out_hbm.shape == (batch, seq, embed_dim)
    assert jnp.allclose(out_hbm, ref), "HBM DMA gather mismatch"

    print("KERNEL_OK")
</pallas_src>

<mosaic_0001>
module attributes {stable_mosaic.version = 11 : i64} {
  func.func @_onehot_gather_kernel(%arg0: i32, %arg1: memref<16x1xi32, #tpu.memory_space<vmem>>, %arg2: memref<64x128xf32, #tpu.memory_space<vmem>>, %arg3: memref<16x128xf32, #tpu.memory_space<vmem>>) attributes {dimension_semantics = [#tpu.dimension_semantics<parallel>], iteration_bounds = array<i64: 1>, scalar_prefetch = 0 : i64, scratch_operands = 0 : i64, tpu.core_type = #tpu.core_type<tc>, window_params = [{transform_indices = @transform_0, window_bounds = array<i64: 16, 1>}, {pipeline_mode = #tpu.pipeline_mode<synchronous>, transform_indices = @transform_1, window_bounds = array<i64: 64, 128>}, {transform_indices = @transform_2, window_bounds = array<i64: 16, 128>}]} {
    %c0 = arith.constant 0 : index
    %c0_0 = arith.constant 0 : index
    %0 = vector.load %arg1[%c0, %c0_0] : memref<16x1xi32, #tpu.memory_space<vmem>>, vector<16x1xi32>
    %cst = arith.constant 0.000000e+00 : f32
    %1 = vector.broadcast %cst : f32 to vector<16x128xf32>
    %2 = tpu.iota {dimensions = array<i32: 1>} : vector<16x64xi32>
    %c0_i32 = arith.constant 0 : i32
    %3 = vector.broadcast %c0_i32 : i32 to vector<16x64xi32>
    %4 = arith.addi %2, %3 : vector<16x64xi32>
    %5 = vector.broadcast %0 : vector<16x1xi32> to vector<16x64xi32>
    %6 = arith.cmpi eq, %4, %5 : vector<16x64xi32>
    %7 = arith.extui %6 : vector<16x64xi1> to vector<16x64xi32>
    %8 = arith.sitofp %7 : vector<16x64xi32> to vector<16x64xf32>
    %c0_1 = arith.constant 0 : index
    %c0_2 = arith.constant 0 : index
    %9 = vector.load %arg2[%c0_1, %c0_2] : memref<64x128xf32, #tpu.memory_space<vmem>>, vector<64x128xf32>
    %cst_3 = arith.constant dense<0.000000e+00> : vector<16x128xf32>
    %10 = tpu.matmul %8, %9, %cst_3 {dimension_numbers = #tpu.dot_dimension_numbers<[1], [0], [0], [1], [0, 0, 1, 1], [], []>} : vector<16x64xf32>, vector<64x128xf32>, vector<16x128xf32> -> vector<16x128xf32>
    %11 = arith.addf %1, %10 : vector<16x128xf32>
    %c0_4 = arith.constant 0 : index
    %c0_5 = arith.constant 0 : index
    %12 = vector.load %arg3[%c0_4, %c0_5] : memref<16x128xf32, #tpu.memory_space<vmem>>, vector<16x128xf32>
    tpu.vector_store %arg3[%c0_4, %c0_5], %11 {strides = array<i32>} : memref<16x128xf32, #tpu.memory_space<vmem>>, vector<16x128xf32>,
    return
  }
  func.func @transform_0(%arg0: i32) -> (i32, i32) {
    %c0_i32 = arith.constant 0 : i32
    %c0_i32_0 = arith.constant 0 : i32
    return %arg0, %c0_i32 : i32, i32
  }
  func.func @transform_1(%arg0: i32) -> (i32, i32) {
    %c0_i32 = arith.constant 0 : i32
    %c0_i32_0 = arith.constant 0 : i32
    %c0_i32_1 = arith.constant 0 : i32
    return %c0_i32, %c0_i32_0 : i32, i32
  }
  func.func @transform_2(%arg0: i32) -> (i32, i32) {
    %c0_i32 = arith.constant 0 : i32
    %c0_i32_0 = arith.constant 0 : i32
    return %arg0, %c0_i32 : i32, i32
  }
}

</mosaic_0001>

<llo_original>
// kernel: tpu_custom_call.1
$region0: #{tpu_custom_call.1}
  #allocation0 [shape = 'u32[]', space=smem, size = 0x4, offset = 0x4, fixed_abs, tag = 'smem constant byte address 0x4 - core index']
  #allocation1 [shape = 'u32[144,128]{1,0:T(1,128)}', space=vmem, size = 0x12000, scoped, tag = 'internal scratch']
  %s0 = inlined_call_operand.vmem [shape: s32[16,1], index: 0, kind: input, shape index: {}]
  %s1 = inlined_call_operand.hbm [shape: f32[64,128], index: 1, kind: input, shape index: {}]
  %s2 = inlined_call_operand.hbm [shape: f32[16,128], index: 2, kind: output, shape index: {}]
  %s3 = sld [smem:[#allocation0]]
  $region22: #{tpu_custom_call.1} parent=0
    _
  %s5 = ssub.s32 1, %s3
  %s6 = scalar_select 0, %s5, %s3
  $region1: #{tpu_custom_call.1} parent=0
    #allocation2 [shape = 'u8[32768]{0}', space=vmem, size = 0x8000, scoped, tag = 'input window, operand 1, single buffered']
    #allocation3 [shape = 's32[1]{0}', space=sflag, size = 0x4, scoped, tag = 'scoped memory for tpu_custom_call.1']
    #allocation4 [shape = 's32[1]{0}', space=sflag, size = 0x4, scoped, tag = 'scoped memory for tpu_custom_call.1']
    #allocation5 [shape = 'u8[8192]{0}', space=vmem, size = 0x2000, scoped, tag = 'output window, operand 0, single buffered']
    %7 = vsyncpa [#allocation3], 0
    %8 = vsyncpa [#allocation4], 0
    // Predicated region
    $region2: #{tpu_custom_call.1} parent=1 // pred_check
      _
    $region3: #{tpu_custom_call.1} parent=1 // pred_check_branch
      %10 = sbr.rel (0) target = $region5
    $region4: #{tpu_custom_call.1} parent=1 // pred_region
      _
    $region5: #{tpu_custom_call.1} parent=1 // pred_fallthru
      _
    // Predicated region
    $region6: #{tpu_custom_call.1} parent=1 // pred_check
      _
    $region7: #{tpu_custom_call.1} parent=1 // pred_check_branch
      %12 = sbr.rel (0) target = $region9
    $region8: #{tpu_custom_call.1} parent=1 // pred_region
      %s14 = ssub.s32 1024, 1024
      %15 = vsyncadd [#allocation3], %s14
      %s16 = sshll.u32 [#allocation2], 4
      %s17 = int_to_ptr.vmem [resolvable:$true] %s16
      %22 = dma.hbm_to_vmem [thread:$0]  %s1, 1024, %s17, [#allocation3], 128, 128, 8
    $region9: #{tpu_custom_call.1} parent=1 // pred_fallthru
      _
    // Predicated region
    $region10: #{tpu_custom_call.1} parent=1 // pred_check
      _
    $region11: #{tpu_custom_call.1} parent=1 // pred_check_branch
      %24 = sbr.rel (0) target = $region13
    $region12: #{tpu_custom_call.1} parent=1 // pred_region
      %25 = dma.done [#allocation3], 1024
    $region13: #{tpu_custom_call.1} parent=1 // pred_fallthru
      _
    %v26 = vld [vmem:[%s0] sm:$0xff]
    %v27 = vld [vmem:[%s0 + $0x8] sm:$0xff]
    %v28 = vlaneseq
    %v29 = vand.u32 %v28, 127
    %30 = vset.pattern.permute.xlu0 0
    %31 = vperm.xlu0 %30, %v26
    %v32 = vpop.permute.xlu0 %31
    %33 = vset.pattern.permute.xlu0 0
    %34 = vperm.xlu0 %33, %v27
    %v35 = vpop.permute.xlu0 %34
    %vm36 = vcmp.eq.s32.totalorder %v29, %v32
    %vm37 = vcmp.eq.s32.totalorder %v29, %v35
    %v38 = vsel %vm36, 1, 0
    %v39 = vsel %vm37, 1, 0
    %v40 = vcvt.s32.f32 %v38
    %v41 = vcvt.s32.f32 %v39
    %v42 = vld [vmem:[#allocation2] sm:$0xff]
    %v43 = vld [vmem:[#allocation2 + $0x8] sm:$0xff]
    %v44 = vld [vmem:[#allocation2 + $0x10] sm:$0xff]
    %v45 = vld [vmem:[#allocation2 + $0x18] sm:$0xff]
    %v46 = vld [vmem:[#allocation2 + $0x20] sm:$0xff]
    %v47 = vld [vmem:[#allocation2 + $0x28] sm:$0xff]
    %v48 = vld [vmem:[#allocation2 + $0x30] sm:$0xff]
    %v49 = vld [vmem:[#allocation2 + $0x38] sm:$0xff]
    %vm50 = vcmask 523264
    %v52 = vsel %vm50, %v40, 0
    %v55 = vsel %vm50, %v41, 0
    %57 = vmatprep.subr.mxu0 0.0
    %58 = vmatpush1.msra.mxu0 0.0
    %59 = vmatprep.subr.mxu0 0.0
    %60 = vmatpush1.msra.mxu0 0.0
    %61 = vmatprep.subr.mxu0 0.0
    %62 = vmatpush1.msra.mxu0 0.0
    %63 = vmatprep.subr.mxu0 0.0
    %64 = vmatpush1.msra.mxu0 0.0
    %65 = vmatprep.subr.mxu0 0.0
    %66 = vmatpush1.msra.mxu0 0.0
    %67 = vmatprep.subr.mxu0 0.0
    %68 = vmatpush1.msra.mxu0 0.0
    %69 = vmatprep.subr.mxu0 0.0
    %70 = vmatpush1.msra.mxu0 0.0
    %71 = vmatprep.subr.mxu0 0.0
    %72 = vmatpush1.msra.mxu0 0.0
    %73 = vmatprep.subr.mxu0 0.0
    %74 = vmatpush1.msra.mxu0 %v49
    %75 = vmatprep.subr.mxu0 0.0
    %76 = vmatpush1.msra.mxu0 %v48
    %77 = vmatprep.subr.mxu0 0.0
    %78 = vmatpush1.msra.mxu0 %v47
    %79 = vmatprep.subr.mxu0 0.0
    %80 = vmatpush1.msra.mxu0 %v46
    %81 = vmatprep.subr.mxu0 0.0
    %82 = vmatpush1.msra.mxu0 %v45
    %83 = vmatprep.subr.mxu0 0.0
    %84 = vmatpush1.msra.mxu0 %v44
    %85 = vmatprep.subr.mxu0 0.0
    %86 = vmatpush1.msra.mxu0 %v43
    %87 = vmatprep.subr.mxu0 0.0
    %88 = vmatpush1.msra.mxu0 %v42
    %89 = vmatprep.subr.mxu0 0.0
    %90 = vmatpush2.msra.mxu0 0.0
    %91 = vmatprep.subr.mxu0 0.0
    %92 = vmatpush2.msra.mxu0 0.0
    %93 = vmatprep.subr.mxu0 0.0
    %94 = vmatpush2.msra.mxu0 0.0
    %95 = vmatprep.subr.mxu0 0.0
    %96 = vmatpush2.msra.mxu0 0.0
    %97 = vmatprep.subr.mxu0 0.0
    %98 = vmatpush2.msra.mxu0 0.0
    %99 = vmatprep.subr.mxu0 0.0
    %100 = vmatpush2.msra.mxu0 0.0
    %101 = vmatprep.subr.mxu0 0.0
    %102 = vmatpush2.msra.mxu0 0.0
    %103 = vmatprep.subr.mxu0 0.0
    %104 = vmatpush2.msra.mxu0 0.0
    %105 = vmatprep.subr.mxu0 0.0
    %106 = vmatpush2.msra.mxu0 0.0
    %107 = vmatprep.subr.mxu0 0.0
    %108 = vmatpush2.msra.mxu0 0.0
    %109 = vmatprep.subr.mxu0 0.0
    %110 = vmatpush2.msra.mxu0 0.0
    %111 = vmatprep.subr.mxu0 0.0
    %112 = vmatpush2.msra.mxu0 0.0
    %113 = vmatprep.subr.mxu0 0.0
    %114 = vmatpush2.msra.mxu0 0.0
    %115 = vmatprep.subr.mxu0 0.0
    %116 = vmatpush2.msra.mxu0 0.0
    %117 = vmatprep.subr.mxu0 0.0
    %118 = vmatpush2.msra.mxu0 0.0
    %119 = vmatprep.subr.mxu0 0.0
    %120 = vmatpush2.msra.mxu0 0.0
    %121 = vmatprep.mubr.f32.mxu0 0.0
    %122 = vmatmul.mubr.f32.gmra.mxu0 %v52
    %v123 = vpop.f32.mrf.mxu0
    %v124 = vadd.f32 0.0, %v123
    %v125 = vpop.f32.mrf.mxu0
    %126 = vmatprep.mubr.f32.mxu0 0.0
    %127 = vmatmul.mubr.f32.gmra.mxu0 %v55
    %v128 = vpop.f32.mrf.mxu0
    %v129 = vadd.f32 0.0, %v128
    %v130 = vpop.f32.mrf.mxu0
    %131 = vdwg.mxu0
    %132 = vst [vmem:[#allocation5] sm:$0xff] %v124
    %133 = vst [vmem:[#allocation5 + $0x8] sm:$0xff] %v129
    // Predicated region
    $region14: #{tpu_custom_call.1} parent=1 // pred_check
      _
    $region15: #{tpu_custom_call.1} parent=1 // pred_check_branch
      %135 = sbr.rel (0) target = $region17
    $region16: #{tpu_custom_call.1} parent=1 // pred_region
      %s137 = ssub.s32 256, 256
      %138 = vsyncadd [#allocation4], %s137
      %s139 = sshll.u32 [#allocation5], 4
      %s140 = int_to_ptr.vmem [resolvable:$true] %s139
      %145 = dma.vmem_to_hbm [thread:$0]  %s140, 256, %s2, [#allocation4], 128, 128, 8
    $region17: #{tpu_custom_call.1} parent=1 // pred_fallthru
      _
    // Predicated region
    $region18: #{tpu_custom_call.1} parent=1 // pred_check
      _
    $region19: #{tpu_custom_call.1} parent=1 // pred_check_branch
      %147 = sbr.rel (0) target = $region21
    $region20: #{tpu_custom_call.1} parent=1 // pred_region
      %148 = dma.done [#allocation4], 256
    $region21: #{tpu_custom_call.1} parent=1 // pred_fallthru
      _
    %149 = vsyncpa [#allocation3], 1
    %150 = vsyncpa [#allocation4], 1

</llo_original>
